<compile_context>
chip_gen: v5e
topology: v5e:2x2
jax: 0.10.0
libtpu: 0.0.40
codegen_flags: <defaults>
</compile_context>

<pallas_src>
import jax
import jax.numpy as jnp
from jax.experimental import pallas as pl
from jax.experimental.pallas import tpu as pltpu

BN_EPS = 1e-5


def _round_up(x: int, m: int) -> int:
    return -(-x // m) * m


# ---------------------------------------------------------------------------
# Pass 1: global average pool (as a sum; 1/HW folded into W) + Linear
# ---------------------------------------------------------------------------
def pool_fc_kernel(feat_ref, w_ref, b_ref, y_ref):
    # feat_ref: (tile_n, HW, C)   w_ref: (C, E_pad) pre-scaled by 1/HW
    # b_ref:    (1, E_pad)        y_ref: (tile_n, E_pad) f32
    pooled = jnp.sum(feat_ref[...].astype(jnp.float32), axis=1)      # (tile_n, C)
    y_ref[...] = (
        jnp.dot(pooled, w_ref[...], preferred_element_type=jnp.float32)
        + b_ref[...]
    )


# ---------------------------------------------------------------------------
# Pass 2: BatchNorm1d (training mode: batch mean / biased variance), fused affine
# ---------------------------------------------------------------------------
def batchnorm_kernel(y_ref, gamma_ref, beta_ref, out_ref, mean_ref, var_ref):
    y = y_ref[...]                                                   # (N, E_pad) f32
    mu = jnp.mean(y, axis=0, keepdims=True)
    var = jnp.mean((y - mu) * (y - mu), axis=0, keepdims=True)       # biased (PyTorch BN norm)
    scale = gamma_ref[...] * jax.lax.rsqrt(var + BN_EPS)
    shift = beta_ref[...] - mu * scale
    out_ref[...] = (y * scale + shift).astype(out_ref.dtype)
    mean_ref[...] = mu
    var_ref[...] = var


def encoder_head(feat_nchw, w, b, gamma, beta, *, tile_n=8,
                 vmem_limit_bytes=32 * 1024 * 1024):
    """Encoder head: AdaptiveAvgPool2d((1,1)) + Linear(C, E) + BatchNorm1d(E).

    feat_nchw : (N, C, H, W) final backbone feature map.
    w         : (C, E) == pytorch fc.weight.T
    b, gamma, beta : (E,) or (1, E)
    Returns (out (N, E), batch_mean (1, E), batch_var (1, E)); the mean/var
    outputs let the caller update BatchNorm running statistics.
    """
    assert tile_n % 8 == 0, "tile_n must be a multiple of 8 (sublane alignment)"
    N, C, H, W = feat_nchw.shape
    HW = H * W
    E = w.shape[1]
    E_pad = _round_up(E, 128)
    N_pad = _round_up(N, tile_n)

    # NHWC-flattened layout (C on the lane axis); bf16 halves the dominant
    # HBM feature traffic; all in-kernel accumulation is f32.
    feat = jnp.transpose(feat_nchw, (0, 2, 3, 1)).reshape(N, HW, C)
    feat = feat.astype(jnp.bfloat16)
    if N_pad != N:
        feat = jnp.pad(feat, ((0, N_pad - N), (0, 0), (0, 0)))

    # Fold the 1/HW pooling scale into the (small, VMEM-resident) weights and
    # pad the embed dimension to a lane-dense width.
    w_s = w.astype(jnp.float32) / jnp.float32(HW)
    b_p = jnp.reshape(b, (1, E)).astype(jnp.float32)
    gamma_p = jnp.reshape(gamma, (1, E)).astype(jnp.float32)
    beta_p = jnp.reshape(beta, (1, E)).astype(jnp.float32)
    if E_pad != E:
        pad_cols = ((0, 0), (0, E_pad - E))
        w_s = jnp.pad(w_s, pad_cols)
        b_p = jnp.pad(b_p, pad_cols)
        gamma_p = jnp.pad(gamma_p, pad_cols)
        beta_p = jnp.pad(beta_p, pad_cols)

    num_tiles = N_pad // tile_n

    cost = pl.CostEstimate(
        flops=2 * N_pad * C * E_pad + N_pad * HW * C,
        transcendentals=0,
        bytes_accessed=int(feat.size * feat.dtype.itemsize
                           + w_s.size * 4 + b_p.size * 4 + N_pad * E_pad * 4),
    )

    # -------- Pass 1: pool + fc, tiled over batch, double-buffered by BlockSpec
    y = pl.pallas_call(
        pool_fc_kernel,
        out_shape=jax.ShapeDtypeStruct((N_pad, E_pad), jnp.float32),
        grid=(num_tiles,),
        in_specs=[
            pl.BlockSpec((tile_n, HW, C), lambda i: (i, 0, 0)),
            pl.BlockSpec((C, E_pad), lambda i: (0, 0)),     # VMEM-resident across tiles
            pl.BlockSpec((1, E_pad), lambda i: (0, 0)),
        ],
        out_specs=pl.BlockSpec((tile_n, E_pad), lambda i: (i, 0)),
        compiler_params=pltpu.CompilerParams(
            dimension_semantics=("parallel",),
            vmem_limit_bytes=vmem_limit_bytes,
        ),
        cost_estimate=cost,
    )(feat, w_s, b_p)

    # Drop the batch padding before computing batch statistics.
    y = y[:N]

    # -------- Pass 2: tiny single-block BatchNorm1d over (N, E_pad)
    out, batch_mean, batch_var = pl.pallas_call(
        batchnorm_kernel,
        out_shape=(
            jax.ShapeDtypeStruct((N, E_pad), jnp.float32),
            jax.ShapeDtypeStruct((1, E_pad), jnp.float32),
            jax.ShapeDtypeStruct((1, E_pad), jnp.float32),
        ),
        grid=(1,),
        in_specs=[
            pl.BlockSpec((N, E_pad), lambda i: (0, 0)),
            pl.BlockSpec((1, E_pad), lambda i: (0, 0)),
            pl.BlockSpec((1, E_pad), lambda i: (0, 0)),
        ],
        out_specs=(
            pl.BlockSpec((N, E_pad), lambda i: (0, 0)),
            pl.BlockSpec((1, E_pad), lambda i: (0, 0)),
            pl.BlockSpec((1, E_pad), lambda i: (0, 0)),
        ),
        compiler_params=pltpu.CompilerParams(
            dimension_semantics=("arbitrary",),
        ),
    )(y, gamma_p, beta_p)

    return out[:, :E], batch_mean[:, :E], batch_var[:, :E]


def reference_head(feat_nchw, w, b, gamma, beta):
    pooled = jnp.mean(feat_nchw.astype(jnp.float32), axis=(2, 3))
    y = pooled @ w.astype(jnp.float32) + jnp.reshape(b, (1, -1))
    mu = jnp.mean(y, axis=0, keepdims=True)
    var = jnp.mean((y - mu) ** 2, axis=0, keepdims=True)
    out = (y - mu) / jnp.sqrt(var + BN_EPS) * jnp.reshape(gamma, (1, -1)) \
        + jnp.reshape(beta, (1, -1))
    return out, mu, var


if __name__ == "__main__":
    # Small stand-ins for the real (N, 2048, 7, 7) backbone features / embed_size.
    N, C, H, W = 20, 256, 4, 4
    EMBED = 80   # deliberately NOT a multiple of 128 -> exercises lane padding

    key = jax.random.PRNGKey(0)
    k_feat, k_w, k_b = jax.random.split(key, 3)

    feat = jax.random.normal(k_feat, (N, C, H, W), dtype=jnp.float32)
    # fc: PyTorch init ~ U(-1/sqrt(C), 1/sqrt(C)); stored transposed as (C, E).
    bound = 1.0 / jnp.sqrt(jnp.float32(C))
    w = jax.random.uniform(k_w, (C, EMBED), minval=-bound, maxval=bound, dtype=jnp.float32)
    b = jax.random.uniform(k_b, (1, EMBED), minval=-bound, maxval=bound, dtype=jnp.float32)
    # BatchNorm1d default init: gamma = 1, beta = 0.
    gamma = jnp.ones((1, EMBED), dtype=jnp.float32)
    beta = jnp.zeros((1, EMBED), dtype=jnp.float32)

    out, batch_mean, batch_var = encoder_head(feat, w, b, gamma, beta, tile_n=8)
    out = jax.block_until_ready(out)

    # Reference consumes the same bf16-quantized features the kernel streams.
    feat_q = feat.astype(jnp.bfloat16).astype(jnp.float32)
    ref, ref_mu, ref_var = reference_head(feat_q, w, b, gamma, beta)

    assert out.shape == (N, EMBED)
    assert batch_mean.shape == (1, EMBED) and batch_var.shape == (1, EMBED)
    max_err = jnp.max(jnp.abs(out - ref))
    assert jnp.allclose(out, ref, atol=2e-2, rtol=2e-2), f"mismatch vs reference: {max_err}"
    assert jnp.allclose(batch_mean, ref_mu, atol=2e-2, rtol=2e-2), "batch mean mismatch"
    assert jnp.allclose(batch_var, ref_var, atol=2e-2, rtol=2e-2), "batch var mismatch"

    print("KERNEL_OK")
</pallas_src>

<mosaic_0001>
module attributes {stable_mosaic.version = 11 : i64} {
  func.func @pool_fc_kernel(%arg0: i32, %arg1: memref<8x16x256xbf16, #tpu.memory_space<vmem>>, %arg2: memref<256x128xf32, #tpu.memory_space<vmem>>, %arg3: memref<1x128xf32, #tpu.memory_space<vmem>>, %arg4: memref<8x128xf32, #tpu.memory_space<vmem>>) attributes {dimension_semantics = [#tpu.dimension_semantics<parallel>], iteration_bounds = array<i64: 3>, scalar_prefetch = 0 : i64, scratch_operands = 0 : i64, tpu.core_type = #tpu.core_type<tc>, window_params = [{transform_indices = @transform_0, window_bounds = array<i64: 8, 16, 256>}, {pipeline_mode = #tpu.pipeline_mode<synchronous>, transform_indices = @transform_1, window_bounds = array<i64: 256, 128>}, {pipeline_mode = #tpu.pipeline_mode<synchronous>, transform_indices = @transform_2, window_bounds = array<i64: 1, 128>}, {transform_indices = @transform_3, window_bounds = array<i64: 8, 128>}]} {
    %c0 = arith.constant 0 : index
    %c0_0 = arith.constant 0 : index
    %c0_1 = arith.constant 0 : index
    %0 = vector.load %arg1[%c0, %c0_0, %c0_1] : memref<8x16x256xbf16, #tpu.memory_space<vmem>>, vector<8x16x256xbf16>
    %1 = arith.extf %0 : vector<8x16x256xbf16> to vector<8x16x256xf32>
    %cst = arith.constant dense<0.000000e+00> : vector<8x256xf32>
    %2 = vector.multi_reduction <add>, %1, %cst [1] : vector<8x16x256xf32> to vector<8x256xf32>
    %c0_2 = arith.constant 0 : index
    %c0_3 = arith.constant 0 : index
    %3 = vector.load %arg2[%c0_2, %c0_3] : memref<256x128xf32, #tpu.memory_space<vmem>>, vector<256x128xf32>
    %cst_4 = arith.constant dense<0.000000e+00> : vector<8x128xf32>
    %4 = tpu.matmul %2, %3, %cst_4 {dimension_numbers = #tpu.dot_dimension_numbers<[1], [0], [0], [1], [0, 0, 1, 1], [], []>} : vector<8x256xf32>, vector<256x128xf32>, vector<8x128xf32> -> vector<8x128xf32>
    %c0_5 = arith.constant 0 : index
    %c0_6 = arith.constant 0 : index
    %5 = vector.load %arg3[%c0_5, %c0_6] : memref<1x128xf32, #tpu.memory_space<vmem>>, vector<1x128xf32>
    %6 = vector.broadcast %5 : vector<1x128xf32> to vector<8x128xf32>
    %7 = arith.addf %4, %6 : vector<8x128xf32>
    %c0_7 = arith.constant 0 : index
    %c0_8 = arith.constant 0 : index
    %8 = vector.load %arg4[%c0_7, %c0_8] : memref<8x128xf32, #tpu.memory_space<vmem>>, vector<8x128xf32>
    tpu.vector_store %arg4[%c0_7, %c0_8], %7 {strides = array<i32>} : memref<8x128xf32, #tpu.memory_space<vmem>>, vector<8x128xf32>,
    return
  }
  func.func @transform_0(%arg0: i32) -> (i32, i32, i32) {
    %c0_i32 = arith.constant 0 : i32
    %c0_i32_0 = arith.constant 0 : i32
    %c0_i32_1 = arith.constant 0 : i32
    return %arg0, %c0_i32, %c0_i32_0 : i32, i32, i32
  }
  func.func @transform_1(%arg0: i32) -> (i32, i32) {
    %c0_i32 = arith.constant 0 : i32
    %c0_i32_0 = arith.constant 0 : i32
    %c0_i32_1 = arith.constant 0 : i32
    return %c0_i32, %c0_i32_0 : i32, i32
  }
  func.func @transform_2(%arg0: i32) -> (i32, i32) {
    %c0_i32 = arith.constant 0 : i32
    %c0_i32_0 = arith.constant 0 : i32
    %c0_i32_1 = arith.constant 0 : i32
    return %c0_i32, %c0_i32_0 : i32, i32
  }
  func.func @transform_3(%arg0: i32) -> (i32, i32) {
    %c0_i32 = arith.constant 0 : i32
    %c0_i32_0 = arith.constant 0 : i32
    return %arg0, %c0_i32 : i32, i32
  }
}

</mosaic_0001>

<llo_original>
// kernel: tpu_custom_call.1
$region0: #{tpu_custom_call.1}
  #allocation0 [shape = 'u32[]', space=smem, size = 0x4, offset = 0x4, fixed_abs, tag = 'smem constant byte address 0x4 - core index']
  #allocation1 [shape = 'u32[72,128]{1,0:T(1,128)}', space=vmem, size = 0x9000, scoped, tag = 'internal scratch']
  %s0 = inlined_call_operand.hbm [shape: bf16[24,16,256], index: 0, kind: input, shape index: {}]
  %s1 = inlined_call_operand.hbm [shape: f32[256,128], index: 1, kind: input, shape index: {}]
  %s2 = inlined_call_operand.vmem [shape: f32[1,128], index: 2, kind: input, shape index: {}]
  %s3 = inlined_call_operand.hbm [shape: f32[24,128], index: 3, kind: output, shape index: {}]
  %s4 = sld [smem:[#allocation0]]
  $region53: #{tpu_custom_call.1} parent=0
    _
  %s6 = ssub.s32 1, %s4
  %s7 = scalar_select 0, %s6, %s4
  $region1: #{tpu_custom_call.1} parent=0
    #allocation2 [shape = 'u8[131072]{0}', space=vmem, size = 0x20000, scoped, tag = 'input window, operand 0']
    #allocation3 [shape = 's32[2]{0}', space=sflag, size = 0x8, scoped, tag = 'scoped memory for tpu_custom_call.1']
    #allocation4 [shape = 's32[2]{0}', space=sflag, size = 0x8, scoped, tag = 'scoped memory for tpu_custom_call.1']
    #allocation5 [shape = 'u8[131072]{0}', space=vmem, size = 0x20000, scoped, tag = 'input window, operand 1, single buffered']
    #allocation6 [shape = 's32[1]{0}', space=sflag, size = 0x4, scoped, tag = 'scoped memory for tpu_custom_call.1']
    #allocation7 [shape = 'u8[8192]{0}', space=vmem, size = 0x2000, scoped, tag = 'output window, operand 0']
    %8 = vsyncpa [#allocation3], 0
    %s9 = scalar_lea.sflag [#allocation3], 1
    %10 = vsyncpa %s9, 0
    %11 = vsyncpa [#allocation6], 0
    %12 = vsyncpa [#allocation4], 0
    %s13 = scalar_lea.sflag [#allocation4], 1
    %14 = vsyncpa %s13, 0
    loop: start=0, step=1, limit=5
    $region2: #{tpu_custom_call.1} parent=1 // loop_pre_header
      _
    $region3: #{tpu_custom_call.1} parent=1 // loop_header
      %s16 = sphi 0, %s20
      %p17 = scmp.ge.s32.totalorder %s16, 5
      %s26 = sphi 0, %s28
      %s29 = sphi 0, %s26
      %s30 = sphi 0, %s29
      %s46 = sphi 0, %s30
      %s50 = sphi 0, %s50
      %s52 = sphi 0, %s50
      %s53 = sphi 0, %s52
      %s67 = sphi 0, %s53
      %s71 = sphi 0, %s71
      %s73 = sphi 0, %s71
      %s74 = sphi 0, %s73
      %s88 = sphi 0, %s74
      %s94 = sphi 0, %s96
      %s97 = sphi 0, %s94
      %s98 = sphi 0, %s97
      %s114 = sphi 0, %s98
    $region4: #{tpu_custom_call.1} parent=1 // loop_header_branch
      %19 = sbr.rel (%p17) target = $region8
    $region5: #{tpu_custom_call.1} parent=1 // loop_body
      %s21 = ssub.s32 %s16, 1
      %s22 = ssub.s32 %s16, 2
      %s23 = sadd.s32 %s16, 1
      %s24 = ssub.s32 %s16, %s23
      %p25 = scmp.eq.s32.totalorder %s24, 0
      %s27 = sadd.s32 %s26, 1
      %s28 = scalar_select %p25, %s26, %s27
      %p31 = pneg %p25
      %p32 = scmp.eq.s32.totalorder %s16, 2
      %p33 = por %p31, %p32
      %p34 = scmp.ne.s32.totalorder %s26, %s29
      %p35 = scmp.eq.s32.totalorder %s16, 0
      %p36 = por %p34, %p35
      %p37 = scmp.ne.s32.totalorder %s26, %s29
      %p38 = scmp.eq.s32.totalorder %s21, 2
      %p39 = por %p37, %p38
      %p40 = scmp.ne.s32.totalorder %s29, %s30
      %p41 = scmp.eq.s32.totalorder %s21, 0
      %p42 = por %p40, %p41
      %p43 = scmp.ne.s32.totalorder %s29, %s30
      %p44 = scmp.eq.s32.totalorder %s22, 2
      %p45 = por %p43, %p44
      %p47 = scmp.ne.s32.totalorder %s30, %s46
      %p48 = scmp.eq.s32.totalorder %s22, 0
      %p49 = por %p47, %p48
      %s51 = sadd.s32 %s50, 1
      %p54 = scmp.eq.s32.totalorder %s16, 2
      %p55 = scmp.ne.s32.totalorder %s50, %s52
      %p56 = scmp.eq.s32.totalorder %s16, 0
      %p57 = por %p55, %p56
      %p58 = scmp.ne.s32.totalorder %s50, %s52
      %p59 = scmp.eq.s32.totalorder %s21, 2
      %p60 = por %p58, %p59
      %p61 = scmp.ne.s32.totalorder %s52, %s53
      %p62 = scmp.eq.s32.totalorder %s21, 0
      %p63 = por %p61, %p62
      %p64 = scmp.ne.s32.totalorder %s52, %s53
      %p65 = scmp.eq.s32.totalorder %s22, 2
      %p66 = por %p64, %p65
      %p68 = scmp.ne.s32.totalorder %s53, %s67
      %p69 = scmp.eq.s32.totalorder %s22, 0
      %p70 = por %p68, %p69
      %s72 = sadd.s32 %s71, 1
      %p75 = scmp.eq.s32.totalorder %s16, 2
      %p76 = scmp.ne.s32.totalorder %s71, %s73
      %p77 = scmp.eq.s32.totalorder %s16, 0
      %p78 = por %p76, %p77
      %p79 = scmp.ne.s32.totalorder %s71, %s73
      %p80 = scmp.eq.s32.totalorder %s21, 2
      %p81 = por %p79, %p80
      %p82 = scmp.ne.s32.totalorder %s73, %s74
      %p83 = scmp.eq.s32.totalorder %s21, 0
      %p84 = por %p82, %p83
      %p85 = scmp.ne.s32.totalorder %s73, %s74
      %p86 = scmp.eq.s32.totalorder %s22, 2
      %p87 = por %p85, %p86
      %p89 = scmp.ne.s32.totalorder %s74, %s88
      %p90 = scmp.eq.s32.totalorder %s22, 0
      %p91 = por %p89, %p90
      %s92 = ssub.s32 %s16, %s23
      %p93 = scmp.eq.s32.totalorder %s92, 0
      %s95 = sadd.s32 %s94, 1
      %s96 = scalar_select %p93, %s94, %s95
      %p99 = pneg %p93
      %p100 = scmp.eq.s32.totalorder %s16, 2
      %p101 = por %p99, %p100
      %p102 = scmp.ne.s32.totalorder %s94, %s97
      %p103 = scmp.eq.s32.totalorder %s16, 0
      %p104 = por %p102, %p103
      %p105 = scmp.ne.s32.totalorder %s94, %s97
      %p106 = scmp.eq.s32.totalorder %s21, 2
      %p107 = por %p105, %p106
      %p108 = scmp.ne.s32.totalorder %s97, %s98
      %p109 = scmp.eq.s32.totalorder %s21, 0
      %p110 = por %p108, %p109
      %p111 = scmp.ne.s32.totalorder %s97, %s98
      %p112 = scmp.eq.s32.totalorder %s22, 2
      %p113 = por %p111, %p112
      %p115 = scmp.ne.s32.totalorder %s98, %s114
      %p116 = scmp.eq.s32.totalorder %s22, 0
      %p117 = por %p115, %p116
      %p118 = scmp.le.s32.totalorder 1, %s16
      %p119 = scmp.lt.s32.totalorder %s16, 4
      %p120 = pnand %p118, %p119
      %p121 = pneg %p120
      // Predicated region
      $region9: #{tpu_custom_call.1} parent=5 // pred_check
        _
      $region10: #{tpu_custom_call.1} parent=5 // pred_check_branch
        %123 = sbr.rel (%p120) target = $region12
      $region11: #{tpu_custom_call.1} parent=5 // pred_region
        %s124 = ssub.s32 %s16, 1
        // Predicated region
        $region13: #{tpu_custom_call.1} parent=11 // pred_check
          %p125 = pneg %p63
        $region14: #{tpu_custom_call.1} parent=11 // pred_check_branch
          %127 = sbr.rel (%p125) target = $region16
        $region15: #{tpu_custom_call.1} parent=11 // pred_region
          %129 = vsyncadd [#allocation6], 0
          %s130 = sshll.u32 %s1, 4
          %s131 = int_to_ptr.hbm [resolvable:$true] %s130
          %s132 = sshll.u32 [#allocation5], 4
          %s133 = int_to_ptr.vmem [resolvable:$true] %s132
          %138 = dma.hbm_to_vmem [thread:$0]  %s131, 4096, %s133, [#allocation6], 128, 128, 8
        $region16: #{tpu_custom_call.1} parent=11 // pred_fallthru
          _
        // Predicated region
        $region17: #{tpu_custom_call.1} parent=11 // pred_check
          %p139 = pneg %p84
        $region18: #{tpu_custom_call.1} parent=11 // pred_check_branch
          %141 = sbr.rel (%p139) target = $region20
        $region19: #{tpu_custom_call.1} parent=11 // pred_region
          _
        $region20: #{tpu_custom_call.1} parent=11 // pred_fallthru
          _
      $region12: #{tpu_custom_call.1} parent=5 // pred_fallthru
        _
      %p142 = scmp.lt.s32.totalorder %s16, 3
      // Predicated region
      $region21: #{tpu_custom_call.1} parent=5 // pred_check
        %p143 = pneg %p142
      $region22: #{tpu_custom_call.1} parent=5 // pred_check_branch
        %145 = sbr.rel (%p143) target = $region24
      $region23: #{tpu_custom_call.1} parent=5 // pred_region
        // Predicated region
        $region25: #{tpu_custom_call.1} parent=23 // pred_check
          %p146 = pneg %p36
        $region26: #{tpu_custom_call.1} parent=23 // pred_check_branch
          %148 = sbr.rel (%p146) target = $region28
        $region27: #{tpu_custom_call.1} parent=23 // pred_region
          %s149 = sand.u32 %s26, 1
          %s150 = scalar_lea.sflag [#allocation3], %s149
          %s151 = sand.u32 %s26, 1
          %s152 = smul.addr %s151, 128
          %s153 = scalar_lea.vmem [#allocation2], %s152
          %s154 = smul.u32 8, %s16
          %156 = vsyncadd %s150, 0
          %s157 = smul.addr %s154, 4
          %s158 = smul.addr %s157, 4
          %s159 = scalar_lea.hbm %s0, %s158
          %s160 = sshll.u32 %s159, 4
          %s161 = int_to_ptr.hbm [resolvable:$true] %s160
          %s162 = sshll.u32 %s153, 4
          %s163 = int_to_ptr.vmem [resolvable:$true] %s162
          %168 = dma.hbm_to_vmem [thread:$0]  %s161, 2048, %s163, %s150, 128, 128, 8
        $region28: #{tpu_custom_call.1} parent=23 // pred_fallthru
          _
      $region24: #{tpu_custom_call.1} parent=5 // pred_fallthru
        _
      %p169 = scmp.le.s32.totalorder 1, %s16
      %p170 = scmp.lt.s32.totalorder %s16, 4
      %p171 = pnand %p169, %p170
      %p172 = pneg %p171
      // Predicated region
      $region29: #{tpu_custom_call.1} parent=5 // pred_check
        _
      $region30: #{tpu_custom_call.1} parent=5 // pred_check_branch
        %174 = sbr.rel (%p171) target = $region32
      $region31: #{tpu_custom_call.1} parent=5 // pred_region
        %s175 = ssub.s32 %s16, 1
        %s176 = sand.u32 %s29, 1
        %s177 = scalar_lea.sflag [#allocation3], %s176
        %s178 = sand.u32 %s29, 1
        %s179 = smul.addr %s178, 128
        %s180 = scalar_lea.vmem [#allocation2], %s179
        // Predicated region
        $region33: #{tpu_custom_call.1} parent=31 // pred_check
          %p181 = pneg %p42
        $region34: #{tpu_custom_call.1} parent=31 // pred_check_branch
          %183 = sbr.rel (%p181) target = $region36
        $region35: #{tpu_custom_call.1} parent=31 // pred_region
          %185 = dma.done %s177, 2048
        $region36: #{tpu_custom_call.1} parent=31 // pred_fallthru
          _
        // Predicated region
        $region37: #{tpu_custom_call.1} parent=31 // pred_check
          %p186 = pneg %p63
        $region38: #{tpu_custom_call.1} parent=31 // pred_check_branch
          %188 = sbr.rel (%p186) target = $region40
        $region39: #{tpu_custom_call.1} parent=31 // pred_region
          %190 = dma.done [#allocation6], 4096
        $region40: #{tpu_custom_call.1} parent=31 // pred_fallthru
          _
        %s191 = sand.u32 %s29, 1
        %s192 = scalar_lea.sflag [#allocation3], %s191
        %s193 = sand.u32 %s29, 1
        %s194 = smul.addr %s193, 128
        %s195 = scalar_lea.vmem [#allocation2], %s194
        %p196 = pneg %p42
        %p197 = pneg %p39
        %p198 = pneg %p63
        %p199 = pneg %p60
        %p200 = pneg %p84
        %p201 = pneg %p81
        %p202 = pneg %p110
        %p203 = pneg %p107
        %s204 = sand.u32 %s97, 1
        %s205 = scalar_lea.sflag [#allocation4], %s204
        %s206 = sand.u32 %s97, 1
        %s207 = smul.addr %s206, 8
        %s208 = scalar_lea.vmem [#allocation7], %s207
        %s209 = smul.u32 8, %s21
        %v210 = vld [vmem:[%s180] sm:$0xff]
        %v211 = vld [vmem:[%s180 + $0x8] sm:$0xff]
        %v212 = vld [vmem:[%s180 + $0x10] sm:$0xff]
        %v213 = vld [vmem:[%s180 + $0x18] sm:$0xff]
        %v214 = vld [vmem:[%s180 + $0x20] sm:$0xff]
        %v215 = vld [vmem:[%s180 + $0x28] sm:$0xff]
        %v216 = vld [vmem:[%s180 + $0x30] sm:$0xff]
        %v217 = vld [vmem:[%s180 + $0x38] sm:$0xff]
        %v218 = vld [vmem:[%s180 + $0x40] sm:$0xff]
        %v219 = vld [vmem:[%s180 + $0x48] sm:$0xff]
        %v220 = vld [vmem:[%s180 + $0x50] sm:$0xff]
        %v221 = vld [vmem:[%s180 + $0x58] sm:$0xff]
        %v222 = vld [vmem:[%s180 + $0x60] sm:$0xff]
        %v223 = vld [vmem:[%s180 + $0x68] sm:$0xff]
        %v224 = vld [vmem:[%s180 + $0x70] sm:$0xff]
        %v225 = vld [vmem:[%s180 + $0x78] sm:$0xff]
        %v226 = vunpack.c.l.bf16 %v210
        %v227 = vunpack.c.h.bf16 %v210
        %v228 = vunpack.c.l.bf16 %v211
        %v229 = vunpack.c.h.bf16 %v211
        %v230 = vunpack.c.l.bf16 %v212
        %v231 = vunpack.c.h.bf16 %v212
        %v232 = vunpack.c.l.bf16 %v213
        %v233 = vunpack.c.h.bf16 %v213
        %v234 = vunpack.c.l.bf16 %v214
        %v235 = vunpack.c.h.bf16 %v214
        %v236 = vunpack.c.l.bf16 %v215
        %v237 = vunpack.c.h.bf16 %v215
        %v238 = vunpack.c.l.bf16 %v216
        %v239 = vunpack.c.h.bf16 %v216
        %v240 = vunpack.c.l.bf16 %v217
        %v241 = vunpack.c.h.bf16 %v217
        %v242 = vunpack.c.l.bf16 %v218
        %v243 = vunpack.c.h.bf16 %v218
        %v244 = vunpack.c.l.bf16 %v219
        %v245 = vunpack.c.h.bf16 %v219
        %v246 = vunpack.c.l.bf16 %v220
        %v247 = vunpack.c.h.bf16 %v220
        %v248 = vunpack.c.l.bf16 %v221
        %v249 = vunpack.c.h.bf16 %v221
        %v250 = vunpack.c.l.bf16 %v222
        %v251 = vunpack.c.h.bf16 %v222
        %v252 = vunpack.c.l.bf16 %v223
        %v253 = vunpack.c.h.bf16 %v223
        %v254 = vunpack.c.l.bf16 %v224
        %v255 = vunpack.c.h.bf16 %v224
        %v256 = vunpack.c.l.bf16 %v225
        %v257 = vunpack.c.h.bf16 %v225
        %v258 = vadd.f32 %v226, %v228
        %v259 = vrot.slane %v258, 4
        %v260 = vadd.f32 %v258, %v259
        %v261 = vrot.slane %v260, 2
        %v262 = vadd.f32 %v260, %v261
        %v263 = vrot.slane %v262, 1
        %v264 = vadd.f32 %v262, %v263
        %v265 = vadd.f32 %v227, %v229
        %v266 = vrot.slane %v265, 4
        %v267 = vadd.f32 %v265, %v266
        %v268 = vrot.slane %v267, 2
        %v269 = vadd.f32 %v267, %v268
        %v270 = vrot.slane %v269, 1
        %v271 = vadd.f32 %v269, %v270
        %v272 = vadd.f32 %v230, %v232
        %v273 = vrot.slane %v272, 4
        %v274 = vadd.f32 %v272, %v273
        %v275 = vrot.slane %v274, 2
        %v276 = vadd.f32 %v274, %v275
        %v277 = vrot.slane %v276, 1
        %v278 = vadd.f32 %v276, %v277
        %v279 = vadd.f32 %v231, %v233
        %v280 = vrot.slane %v279, 4
        %v281 = vadd.f32 %v279, %v280
        %v282 = vrot.slane %v281, 2
        %v283 = vadd.f32 %v281, %v282
        %v284 = vrot.slane %v283, 1
        %v285 = vadd.f32 %v283, %v284
        %v286 = vadd.f32 %v234, %v236
        %v287 = vrot.slane %v286, 4
        %v288 = vadd.f32 %v286, %v287
        %v289 = vrot.slane %v288, 2
        %v290 = vadd.f32 %v288, %v289
        %v291 = vrot.slane %v290, 1
        %v292 = vadd.f32 %v290, %v291
        %v293 = vadd.f32 %v235, %v237
        %v294 = vrot.slane %v293, 4
        %v295 = vadd.f32 %v293, %v294
        %v296 = vrot.slane %v295, 2
        %v297 = vadd.f32 %v295, %v296
        %v298 = vrot.slane %v297, 1
        %v299 = vadd.f32 %v297, %v298
        %v300 = vadd.f32 %v238, %v240
        %v301 = vrot.slane %v300, 4
        %v302 = vadd.f32 %v300, %v301
        %v303 = vrot.slane %v302, 2
        %v304 = vadd.f32 %v302, %v303
        %v305 = vrot.slane %v304, 1
        %v306 = vadd.f32 %v304, %v305
        %v307 = vadd.f32 %v239, %v241
        %v308 = vrot.slane %v307, 4
        %v309 = vadd.f32 %v307, %v308
        %v310 = vrot.slane %v309, 2
        %v311 = vadd.f32 %v309, %v310
        %v312 = vrot.slane %v311, 1
        %v313 = vadd.f32 %v311, %v312
        %v314 = vadd.f32 %v242, %v244
        %v315 = vrot.slane %v314, 4
        %v316 = vadd.f32 %v314, %v315
        %v317 = vrot.slane %v316, 2
        %v318 = vadd.f32 %v316, %v317
        %v319 = vrot.slane %v318, 1
        %v320 = vadd.f32 %v318, %v319
        %v321 = vadd.f32 %v243, %v245
        %v322 = vrot.slane %v321, 4
        %v323 = vadd.f32 %v321, %v322
        %v324 = vrot.slane %v323, 2
        %v325 = vadd.f32 %v323, %v324
        %v326 = vrot.slane %v325, 1
        %v327 = vadd.f32 %v325, %v326
        %v328 = vadd.f32 %v246, %v248
        %v329 = vrot.slane %v328, 4
        %v330 = vadd.f32 %v328, %v329
        %v331 = vrot.slane %v330, 2
        %v332 = vadd.f32 %v330, %v331
        %v333 = vrot.slane %v332, 1
        %v334 = vadd.f32 %v332, %v333
        %v335 = vadd.f32 %v247, %v249
        %v336 = vrot.slane %v335, 4
        %v337 = vadd.f32 %v335, %v336
        %v338 = vrot.slane %v337, 2
        %v339 = vadd.f32 %v337, %v338
        %v340 = vrot.slane %v339, 1
        %v341 = vadd.f32 %v339, %v340
        %v342 = vadd.f32 %v250, %v252
        %v343 = vrot.slane %v342, 4
        %v344 = vadd.f32 %v342, %v343
        %v345 = vrot.slane %v344, 2
        %v346 = vadd.f32 %v344, %v345
        %v347 = vrot.slane %v346, 1
        %v348 = vadd.f32 %v346, %v347
        %v349 = vadd.f32 %v251, %v253
        %v350 = vrot.slane %v349, 4
        %v351 = vadd.f32 %v349, %v350
        %v352 = vrot.slane %v351, 2
        %v353 = vadd.f32 %v351, %v352
        %v354 = vrot.slane %v353, 1
        %v355 = vadd.f32 %v353, %v354
        %v356 = vadd.f32 %v254, %v256
        %v357 = vrot.slane %v356, 4
        %v358 = vadd.f32 %v356, %v357
        %v359 = vrot.slane %v358, 2
        %v360 = vadd.f32 %v358, %v359
        %v361 = vrot.slane %v360, 1
        %v362 = vadd.f32 %v360, %v361
        %v363 = vadd.f32 %v255, %v257
        %v364 = vrot.slane %v363, 4
        %v365 = vadd.f32 %v363, %v364
        %v366 = vrot.slane %v365, 2
        %v367 = vadd.f32 %v365, %v366
        %v368 = vrot.slane %v367, 1
        %v369 = vadd.f32 %v367, %v368
        %v370 = vld [vmem:[#allocation5] sm:$0xff]
        %v371 = vld [vmem:[#allocation5 + $0x8] sm:$0xff]
        %v372 = vld [vmem:[#allocation5 + $0x10] sm:$0xff]
        %v373 = vld [vmem:[#allocation5 + $0x18] sm:$0xff]
        %v374 = vld [vmem:[#allocation5 + $0x20] sm:$0xff]
        %v375 = vld [vmem:[#allocation5 + $0x28] sm:$0xff]
        %v376 = vld [vmem:[#allocation5 + $0x30] sm:$0xff]
        %v377 = vld [vmem:[#allocation5 + $0x38] sm:$0xff]
        %v378 = vld [vmem:[#allocation5 + $0x40] sm:$0xff]
        %v379 = vld [vmem:[#allocation5 + $0x48] sm:$0xff]
        %v380 = vld [vmem:[#allocation5 + $0x50] sm:$0xff]
        %v381 = vld [vmem:[#allocation5 + $0x58] sm:$0xff]
        %v382 = vld [vmem:[#allocation5 + $0x60] sm:$0xff]
        %v383 = vld [vmem:[#allocation5 + $0x68] sm:$0xff]
        %v384 = vld [vmem:[#allocation5 + $0x70] sm:$0xff]
        %v385 = vld [vmem:[#allocation5 + $0x78] sm:$0xff]
        %v386 = vld [vmem:[#allocation5 + $0x80] sm:$0xff]
        %v387 = vld [vmem:[#allocation5 + $0x88] sm:$0xff]
        %v388 = vld [vmem:[#allocation5 + $0x90] sm:$0xff]
        %v389 = vld [vmem:[#allocation5 + $0x98] sm:$0xff]
        %v390 = vld [vmem:[#allocation5 + $0xa0] sm:$0xff]
        %v391 = vld [vmem:[#allocation5 + $0xa8] sm:$0xff]
        %v392 = vld [vmem:[#allocation5 + $0xb0] sm:$0xff]
        %v393 = vld [vmem:[#allocation5 + $0xb8] sm:$0xff]
        %v394 = vld [vmem:[#allocation5 + $0xc0] sm:$0xff]
        %v395 = vld [vmem:[#allocation5 + $0xc8] sm:$0xff]
        %v396 = vld [vmem:[#allocation5 + $0xd0] sm:$0xff]
        %v397 = vld [vmem:[#allocation5 + $0xd8] sm:$0xff]
        %v398 = vld [vmem:[#allocation5 + $0xe0] sm:$0xff]
        %v399 = vld [vmem:[#allocation5 + $0xe8] sm:$0xff]
        %v400 = vld [vmem:[#allocation5 + $0xf0] sm:$0xff]
        %v401 = vld [vmem:[#allocation5 + $0xf8] sm:$0xff]
        %v402 = vld [vmem:[%s2] sm:$0x1]
        %v404 = vperm.slane %v402, 0
        %vm422 = vcmask 1041409
        %v423 = vsel %vm422, %v278, %v264
        %vm424 = vcmask 1042434
        %v425 = vsel %vm424, %v292, %v423
        %vm426 = vcmask 1043459
        %v427 = vsel %vm426, %v306, %v425
        %vm428 = vcmask 1044484
        %v429 = vsel %vm428, %v320, %v427
        %vm430 = vcmask 1045509
        %v431 = vsel %vm430, %v334, %v429
        %vm432 = vcmask 1046534
        %v433 = vsel %vm432, %v348, %v431
        %vm434 = vcmask 1047559
        %v435 = vsel %vm434, %v362, %v433
        %v436 = vsel %vm422, %v285, %v271
        %v437 = vsel %vm424, %v299, %v436
        %v438 = vsel %vm426, %v313, %v437
        %v439 = vsel %vm428, %v327, %v438
        %v440 = vsel %vm430, %v341, %v439
        %v441 = vsel %vm432, %v355, %v440
        %v442 = vsel %vm434, %v369, %v441
        %445 = vmatpush.msra.mxu0 %v385
        %446 = vmatpush.msra.mxu0 %v384
        %447 = vmatpush.msra.mxu0 %v383
        %448 = vmatpush.msra.mxu0 %v382
        %449 = vmatpush.msra.mxu0 %v381
        %450 = vmatpush.msra.mxu0 %v380
        %451 = vmatpush.msra.mxu0 %v379
        %452 = vmatpush.msra.mxu0 %v378
        %453 = vmatpush.msra.mxu0 %v377
        %454 = vmatpush.msra.mxu0 %v376
        %455 = vmatpush.msra.mxu0 %v375
        %456 = vmatpush.msra.mxu0 %v374
        %457 = vmatpush.msra.mxu0 %v373
        %458 = vmatpush.msra.mxu0 %v372
        %459 = vmatpush.msra.mxu0 %v371
        %460 = vmatpush.msra.mxu0 %v370
        %461 = vmatmul.f32.gmra.mxu0 %v435
        %v462 = vpop.f32.mrf.mxu0
        %v463 = vadd.f32 %v404, %v462
        %464 = vdwg.mxu0
        %465 = vmatpush.msra.mxu0 %v401
        %466 = vmatpush.msra.mxu0 %v400
        %467 = vmatpush.msra.mxu0 %v399
        %468 = vmatpush.msra.mxu0 %v398
        %469 = vmatpush.msra.mxu0 %v397
        %470 = vmatpush.msra.mxu0 %v396
        %471 = vmatpush.msra.mxu0 %v395
        %472 = vmatpush.msra.mxu0 %v394
        %473 = vmatpush.msra.mxu0 %v393
        %474 = vmatpush.msra.mxu0 %v392
        %475 = vmatpush.msra.mxu0 %v391
        %476 = vmatpush.msra.mxu0 %v390
        %477 = vmatpush.msra.mxu0 %v389
        %478 = vmatpush.msra.mxu0 %v388
        %479 = vmatpush.msra.mxu0 %v387
        %480 = vmatpush.msra.mxu0 %v386
        %481 = vmatmul.f32.gmra.mxu0 %v442
        %v482 = vpop.f32.mrf.mxu0
        %v483 = vadd.f32 %v463, %v482
        %484 = vdwg.mxu0
        %485 = vst [vmem:[%s208] sm:$0xff] %v483
        %s486 = sand.u32 %s97, 1
        %s487 = scalar_lea.sflag [#allocation4], %s486
        %s488 = sand.u32 %s97, 1
        %s489 = smul.addr %s488, 8
        %s490 = scalar_lea.vmem [#allocation7], %s489
        // Predicated region
        $region41: #{tpu_custom_call.1} parent=31 // pred_check
          %p491 = pneg %p107
        $region42: #{tpu_custom_call.1} parent=31 // pred_check_branch
          %493 = sbr.rel (%p491) target = $region44
        $region43: #{tpu_custom_call.1} parent=31 // pred_region
          %495 = vsyncadd %s487, 0
          %s496 = smul.addr %s21, 8
          %s497 = scalar_lea.hbm %s3, %s496
          %s499 = sshll.u32 %s490, 4
          %s500 = int_to_ptr.vmem [resolvable:$true] %s499
          %s501 = sshll.u32 %s497, 4
          %s502 = int_to_ptr.hbm [resolvable:$true] %s501
          %504 = dma.vmem_to_hbm [thread:$0]  %s500, 128, %s502, %s487
        $region44: #{tpu_custom_call.1} parent=31 // pred_fallthru
          _
      $region32: #{tpu_custom_call.1} parent=5 // pred_fallthru
        _
      %p505 = scmp.le.s32.totalorder 2, %s16
      // Predicated region
      $region45: #{tpu_custom_call.1} parent=5 // pred_check
        %p506 = pneg %p505
      $region46: #{tpu_custom_call.1} parent=5 // pred_check_branch
        %508 = sbr.rel (%p506) target = $region48
      $region47: #{tpu_custom_call.1} parent=5 // pred_region
        %s509 = ssub.s32 %s16, 2
        // Predicated region
        $region49: #{tpu_custom_call.1} parent=47 // pred_check
          %p510 = pneg %p113
        $region50: #{tpu_custom_call.1} parent=47 // pred_check_branch
          %512 = sbr.rel (%p510) target = $region52
        $region51: #{tpu_custom_call.1} parent=47 // pred_region
          %s513 = sand.u32 %s98, 1
          %s514 = scalar_lea.sflag [#allocation4], %s513
          %s515 = sand.u32 %s98, 1
          %s516 = smul.addr %s515, 8
          %s517 = scalar_lea.vmem [#allocation7], %s516
          %519 = dma.done %s514, 128
        $region52: #{tpu_custom_call.1} parent=47 // pred_fallthru
          _
      $region48: #{tpu_custom_call.1} parent=5 // pred_fallthru
        _
    $region6: #{tpu_custom_call.1} parent=1 // loop_footer
      %s20 = sadd.s32 1, %s16
    $region7: #{tpu_custom_call.1} parent=1 // loop_footer_branch
      %15 = sbr.rel target = $region3
    $region8: #{tpu_custom_call.1} parent=1 // loop_exit
      _
    %520 = vsyncpa [#allocation3], 1
    %s521 = scalar_lea.sflag [#allocation3], 1
    %522 = vsyncpa %s521, 1
    %523 = vsyncpa [#allocation6], 1
    %524 = vsyncpa [#allocation4], 1
    %s525 = scalar_lea.sflag [#allocation4], 1
    %526 = vsyncpa %s525, 1

</llo_original>
